<compile_context>
chip_gen: v6e
topology: v6e:2x2x1
jax: 0.10.0
libtpu: 0.0.40
codegen_flags: <defaults>
</compile_context>

<pallas_src>
import functools

import jax
import jax.numpy as jnp
from jax.experimental import pallas as pl
from jax.experimental.pallas import tpu as pltpu


def _round_up(x, m):
    return (x + m - 1) // m * m


def _vmem_capacity_bytes():
    try:
        return int(pltpu.get_tpu_info().vmem_capacity_bytes)
    except Exception:
        return 64 << 20          # conservative fallback (v7x physical VMEM)


def _apply_act(y, act_type, negative_slope):
    if act_type == "relu":
        return jnp.maximum(y, 0.0)
    if act_type == "lrelu":
        return jnp.where(y > 0.0, y, negative_slope * y)
    return y


# ---------------------------------------------------------------------------
# Single-pass kernel: conv (one MXU contraction) + InstanceNorm + activation.
# ---------------------------------------------------------------------------
def _fused_kernel(x_ref, w_ref, o_ref, *, p_valid, inv_count, eps,
                  act_type, negative_slope):
    # x_ref: (1, c_eff, p_pad) bf16 im2col patches (zeros in padded columns)
    # w_ref: (co_tile, c_eff)  bf16
    # o_ref: (1, co_tile, p_pad) f32
    acc = jnp.dot(w_ref[...], x_ref[0], preferred_element_type=jnp.float32)
    p_pad = acc.shape[1]
    # Padded columns of `acc` are exactly zero -> mean sum needs no mask.
    mean = jnp.sum(acc, axis=1, keepdims=True) * inv_count
    cen = acc - mean
    if p_pad > p_valid:          # only the centered-square sum needs masking
        col = jax.lax.broadcasted_iota(jnp.int32, (1, p_pad), 1)
        sq = jnp.where(col < p_valid, cen * cen, 0.0)
    else:
        sq = cen * cen
    var = jnp.sum(sq, axis=1, keepdims=True) * inv_count
    y = _apply_act(cen * jax.lax.rsqrt(var + eps), act_type, negative_slope)
    o_ref[0] = y.astype(o_ref.dtype)   # padded tail is trimmed by the wrapper


# ---------------------------------------------------------------------------
# Tiled path, pass 1: conv tile + per-channel sum / sum-of-squares carry.
# ---------------------------------------------------------------------------
def _conv_stats_kernel(x_ref, w_ref, conv_ref, s_ref, ss_ref):
    p = pl.program_id(2)
    acc = jnp.dot(w_ref[...], x_ref[0], preferred_element_type=jnp.float32)
    conv_ref[0] = acc

    @pl.when(p == 0)
    def _():
        s_ref[...] = jnp.zeros_like(s_ref)
        ss_ref[...] = jnp.zeros_like(ss_ref)

    # Padded patch columns are exactly zero -> contribute nothing to stats.
    s_ref[0] += jnp.sum(acc, axis=1, keepdims=True)
    ss_ref[0] += jnp.sum(acc * acc, axis=1, keepdims=True)


# ---------------------------------------------------------------------------
# Tiled path, pass 2: InstanceNorm (from carried stats) + activation.
# ---------------------------------------------------------------------------
def _norm_act_kernel(conv_ref, s_ref, ss_ref, o_ref, *, inv_count, eps,
                     act_type, negative_slope):
    mean = s_ref[0] * inv_count                                # (co_tile, 1)
    # E[x^2] - mean^2 in f32; clamped (cancellation only if |mean| >> std).
    var = jnp.maximum(ss_ref[0] * inv_count - mean * mean, 0.0)
    y = (conv_ref[0] - mean) * jax.lax.rsqrt(var + eps)
    o_ref[0] = _apply_act(y, act_type, negative_slope).astype(o_ref.dtype)


# ---------------------------------------------------------------------------
# Wrapper
# ---------------------------------------------------------------------------
def conv_norm_act(x_nchw, weight, bias=None, *, stride, padding,
                  act_type="relu", eps=1e-5, negative_slope=0.2, tile_p=None):
    """Forward pass matching PyTorch ConvNormAct (Conv2d -> InstanceNorm2d -> act).

    x_nchw: (N, Cin, H, W) f32, weight: (Cout, Cin, K, K), bias: (Cout,).
    `bias` is accepted for API parity but unused: a per-channel additive bias
    cancels exactly under InstanceNorm2d(affine=False).
    `tile_p`: optional spatial tile (multiple of 128); if smaller than the
    padded spatial extent, forces the two-pass spatially-tiled path.
    """
    del bias
    N, Cin, H, W = x_nchw.shape
    Cout, _, K, _ = weight.shape
    Ho = (H + 2 * padding - K) // stride + 1
    Wo = (W + 2 * padding - K) // stride + 1
    P = Ho * Wo
    c_eff = Cin * K * K

    # --- lane-dense im2col: (N, K*K*Cin, P); taps folded into contraction ---
    xp = jnp.pad(x_nchw, ((0, 0), (0, 0),
                          (padding, padding), (padding, padding)))
    pieces = [xp[:, :, ki:ki + Ho * stride:stride, kj:kj + Wo * stride:stride]
              for ki in range(K) for kj in range(K)]       # each (N,Cin,Ho,Wo)
    patches = jnp.stack(pieces, axis=2).reshape(N, c_eff, P).astype(jnp.bfloat16)

    # --- Cout: pad to a 32 multiple, tile unconditionally (<=128 rows) ------
    cout_p = _round_up(Cout, 32)
    co_tile = cout_p if cout_p <= 128 else 128
    cout_p = _round_up(cout_p, co_tile)
    n_co = cout_p // co_tile
    w2 = jnp.pad(weight.reshape(Cout, c_eff),
                 ((0, cout_p - Cout), (0, 0))).astype(jnp.bfloat16)

    # --- VMEM-aware path / spatial tile selection ---------------------------
    def step_bytes(tp):   # per-grid-step VMEM: double-buffered IO + f32 temps
        x_blk = _round_up(c_eff, 16) * tp * 2
        o_blk = _round_up(co_tile, 8) * tp * 4
        w_blk = _round_up(co_tile, 16) * _round_up(c_eff, 128) * 2
        return 2 * x_blk + 2 * o_blk + 2 * w_blk + 3 * o_blk

    p128 = _round_up(P, 128)
    budget = int(_vmem_capacity_bytes() * 0.6)
    if tile_p is not None:
        tile_p = _round_up(tile_p, 128)
        use_tiled = tile_p < p128
    elif step_bytes(p128) <= budget:
        use_tiled = False               # single pass: no extra HBM round trip
    else:
        use_tiled = True
        tile_p = 128
        for cand in (2048, 1024, 512, 256, 128):
            if cand <= p128 and step_bytes(cand) <= budget:
                tile_p = cand
                break

    p_pad = p128 if not use_tiled else _round_up(P, tile_p)
    if p_pad > P:
        patches = jnp.pad(patches, ((0, 0), (0, 0), (0, p_pad - P)))

    inv_count = 1.0 / P
    eff_tile = p_pad if not use_tiled else tile_p
    vmem_limit = max(16 << 20,
                     min(int(step_bytes(eff_tile) * 1.5) + (4 << 20),
                         _vmem_capacity_bytes()))

    if not use_tiled:
        kern = functools.partial(
            _fused_kernel, p_valid=P, inv_count=inv_count, eps=eps,
            act_type=act_type, negative_slope=negative_slope)
        out = pl.pallas_call(
            kern,
            out_shape=jax.ShapeDtypeStruct((N, cout_p, p_pad), jnp.float32),
            grid_spec=pltpu.PrefetchScalarGridSpec(
                num_scalar_prefetch=0,
                grid=(N, n_co),
                in_specs=[
                    pl.BlockSpec((1, c_eff, p_pad), lambda n, j: (n, 0, 0)),
                    pl.BlockSpec((co_tile, c_eff), lambda n, j: (j, 0)),
                ],
                out_specs=pl.BlockSpec((1, co_tile, p_pad),
                                       lambda n, j: (n, j, 0))),
            compiler_params=pltpu.CompilerParams(
                dimension_semantics=("parallel", "parallel"),
                vmem_limit_bytes=vmem_limit),
        )(patches, w2)
    else:
        n_p = p_pad // tile_p
        conv_out, ssum, ssq = pl.pallas_call(
            _conv_stats_kernel,
            out_shape=(
                jax.ShapeDtypeStruct((N, cout_p, p_pad), jnp.float32),
                jax.ShapeDtypeStruct((N, cout_p, 1), jnp.float32),
                jax.ShapeDtypeStruct((N, cout_p, 1), jnp.float32)),
            grid_spec=pltpu.PrefetchScalarGridSpec(
                num_scalar_prefetch=0,
                grid=(N, n_co, n_p),
                in_specs=[
                    pl.BlockSpec((1, c_eff, tile_p), lambda n, j, p: (n, 0, p)),
                    pl.BlockSpec((co_tile, c_eff), lambda n, j, p: (j, 0)),
                ],
                out_specs=(
                    pl.BlockSpec((1, co_tile, tile_p),
                                 lambda n, j, p: (n, j, p)),
                    pl.BlockSpec((1, co_tile, 1), lambda n, j, p: (n, j, 0)),
                    pl.BlockSpec((1, co_tile, 1), lambda n, j, p: (n, j, 0)))),
            compiler_params=pltpu.CompilerParams(
                dimension_semantics=("parallel", "parallel", "arbitrary"),
                vmem_limit_bytes=vmem_limit),
        )(patches, w2)

        kern2 = functools.partial(
            _norm_act_kernel, inv_count=inv_count, eps=eps, act_type=act_type,
            negative_slope=negative_slope)
        out = pl.pallas_call(
            kern2,
            out_shape=jax.ShapeDtypeStruct((N, cout_p, p_pad), jnp.float32),
            grid_spec=pltpu.PrefetchScalarGridSpec(
                num_scalar_prefetch=0,
                grid=(N, n_co, n_p),
                in_specs=[
                    pl.BlockSpec((1, co_tile, tile_p),
                                 lambda n, j, p: (n, j, p)),
                    pl.BlockSpec((1, co_tile, 1), lambda n, j, p: (n, j, 0)),
                    pl.BlockSpec((1, co_tile, 1), lambda n, j, p: (n, j, 0)),
                ],
                out_specs=pl.BlockSpec((1, co_tile, tile_p),
                                       lambda n, j, p: (n, j, p))),
            compiler_params=pltpu.CompilerParams(
                dimension_semantics=("parallel", "parallel", "parallel"),
                vmem_limit_bytes=vmem_limit),
        )(conv_out, ssum, ssq)

    # Trim Cout / spatial padding (no-op when nothing was padded).
    # TODO(synk): fuse this trim into the consumer layer to avoid the copy.
    return out[:, :Cout, :P].reshape(N, Cout, Ho, Wo)


if __name__ == "__main__":
    key = jax.random.PRNGKey(0)
    eps = 1e-5

    def reference(x, w, b, stride, padding, act_type):
        conv = jax.lax.conv_general_dilated(
            x, w, (stride, stride),
            ((padding, padding), (padding, padding)),
            dimension_numbers=("NCHW", "OIHW", "NCHW")) + b.reshape(1, -1, 1, 1)
        mu = conv.mean(axis=(2, 3), keepdims=True)
        var = conv.var(axis=(2, 3), keepdims=True)
        y = (conv - mu) * jax.lax.rsqrt(var + eps)
        if act_type == "relu":
            y = jnp.maximum(y, 0.0)
        elif act_type == "lrelu":
            y = jnp.where(y > 0.0, y, 0.2 * y)
        return y

    # (N, Cin, Cout, H, W, K, stride, padding, act, tile_p)
    cases = [
        (2, 4, 8, 16, 16, 3, 1, 1, "relu", None),   # single-pass fused path
        (2, 4, 8, 16, 16, 3, 2, 1, "lrelu", None),  # stride 2, masked P tail
        (2, 4, 8, 16, 16, 3, 1, 1, "relu", 128),    # forced spatially-tiled path
    ]
    for (N, Cin, Cout, H, W, K, s, p, act, tp) in cases:
        k1, k2, k3, key = jax.random.split(key, 4)
        x = jax.random.normal(k1, (N, Cin, H, W), dtype=jnp.float32)
        bound = 1.0 / (Cin * K * K) ** 0.5
        w = jax.random.uniform(k2, (Cout, Cin, K, K), jnp.float32, -bound, bound)
        b = jax.random.uniform(k3, (Cout,), jnp.float32, -bound, bound)

        y = conv_norm_act(x, w, b, stride=s, padding=p, act_type=act,
                          eps=eps, tile_p=tp)
        y = jax.block_until_ready(y)

        Ho = (H + 2 * p - K) // s + 1
        Wo = (W + 2 * p - K) // s + 1
        assert y.shape == (N, Cout, Ho, Wo), y.shape

        ref = reference(x, w, b, s, p, act)
        err = float(jnp.max(jnp.abs(y - ref)))
        assert err < 0.15, f"case stride={s} act={act} tile_p={tp}: err {err}"

    print("KERNEL_OK")
</pallas_src>

<mosaic_0001>
module attributes {stable_mosaic.version = 11 : i64} {
  func.func @_fused_kernel(%arg0: i32, %arg1: i32, %arg2: memref<1x36x256xbf16, #tpu.memory_space<vmem>>, %arg3: memref<32x36xbf16, #tpu.memory_space<vmem>>, %arg4: memref<1x32x256xf32, #tpu.memory_space<vmem>>) attributes {dimension_semantics = [#tpu.dimension_semantics<parallel>, #tpu.dimension_semantics<parallel>], iteration_bounds = array<i64: 2, 1>, scalar_prefetch = 0 : i64, scratch_operands = 0 : i64, tpu.core_type = #tpu.core_type<tc>, window_params = [{transform_indices = @transform_0, window_bounds = array<i64: 1, 36, 256>}, {transform_indices = @transform_1, window_bounds = array<i64: 32, 36>}, {transform_indices = @transform_2, window_bounds = array<i64: 1, 32, 256>}]} {
    %c0 = arith.constant 0 : index
    %c0_0 = arith.constant 0 : index
    %0 = vector.load %arg3[%c0, %c0_0] : memref<32x36xbf16, #tpu.memory_space<vmem>>, vector<32x36xbf16>
    %c0_1 = arith.constant 0 : index
    %c0_2 = arith.constant 0 : index
    %c0_3 = arith.constant 0 : index
    %1 = vector.load %arg2[%c0_1, %c0_2, %c0_3] : memref<1x36x256xbf16, #tpu.memory_space<vmem>>, vector<1x36x256xbf16>
    %2 = vector.shape_cast %1 : vector<1x36x256xbf16> to vector<36x256xbf16>
    %cst = arith.constant dense<0.000000e+00> : vector<32x256xf32>
    %3 = tpu.matmul %0, %2, %cst {dimension_numbers = #tpu.dot_dimension_numbers<[1], [0], [0], [1], [0, 0, 1, 1], [], []>} : vector<32x36xbf16>, vector<36x256xbf16>, vector<32x256xf32> -> vector<32x256xf32>
    %cst_4 = arith.constant dense<0.000000e+00> : vector<32xf32>
    %4 = vector.multi_reduction <add>, %3, %cst_4 [1] : vector<32x256xf32> to vector<32xf32>
    %5 = vector.shape_cast %4 : vector<32xf32> to vector<32x1xf32>
    %cst_5 = arith.constant 3.906250e-03 : f32
    %6 = vector.broadcast %cst_5 : f32 to vector<32x1xf32>
    %7 = arith.mulf %5, %6 : vector<32x1xf32>
    %8 = vector.broadcast %7 : vector<32x1xf32> to vector<32x256xf32>
    %9 = arith.subf %3, %8 : vector<32x256xf32>
    %10 = arith.mulf %9, %9 : vector<32x256xf32>
    %cst_6 = arith.constant dense<0.000000e+00> : vector<32xf32>
    %11 = vector.multi_reduction <add>, %10, %cst_6 [1] : vector<32x256xf32> to vector<32xf32>
    %12 = vector.shape_cast %11 : vector<32xf32> to vector<32x1xf32>
    %cst_7 = arith.constant 3.906250e-03 : f32
    %13 = vector.broadcast %cst_7 : f32 to vector<32x1xf32>
    %14 = arith.mulf %12, %13 : vector<32x1xf32>
    %cst_8 = arith.constant 9.99999974E-6 : f32
    %15 = vector.broadcast %cst_8 : f32 to vector<32x1xf32>
    %16 = arith.addf %14, %15 : vector<32x1xf32>
    %17 = math.rsqrt %16 : vector<32x1xf32>
    %18 = vector.broadcast %17 : vector<32x1xf32> to vector<32x256xf32>
    %19 = arith.mulf %9, %18 : vector<32x256xf32>
    %cst_9 = arith.constant 0.000000e+00 : f32
    %20 = vector.broadcast %cst_9 : f32 to vector<32x256xf32>
    %21 = arith.maximumf %19, %20 : vector<32x256xf32>
    %c0_10 = arith.constant 0 : index
    %c0_11 = arith.constant 0 : index
    %c0_12 = arith.constant 0 : index
    %22 = vector.load %arg4[%c0_10, %c0_11, %c0_12] : memref<1x32x256xf32, #tpu.memory_space<vmem>>, vector<1x32x256xf32>
    %23 = vector.shape_cast %22 : vector<1x32x256xf32> to vector<32x256xf32>
    %24 = vector.shape_cast %21 : vector<32x256xf32> to vector<1x32x256xf32>
    tpu.vector_store %arg4[%c0_10, %c0_11, %c0_12], %24 {strides = array<i32>} : memref<1x32x256xf32, #tpu.memory_space<vmem>>, vector<1x32x256xf32>,
    return
  }
  func.func @transform_0(%arg0: i32, %arg1: i32) -> (i32, i32, i32) {
    %c0_i32 = arith.constant 0 : i32
    %c0_i32_0 = arith.constant 0 : i32
    %c0_i32_1 = arith.constant 0 : i32
    return %arg0, %c0_i32, %c0_i32_0 : i32, i32, i32
  }
  func.func @transform_1(%arg0: i32, %arg1: i32) -> (i32, i32) {
    %c0_i32 = arith.constant 0 : i32
    %c0_i32_0 = arith.constant 0 : i32
    return %arg1, %c0_i32 : i32, i32
  }
  func.func @transform_2(%arg0: i32, %arg1: i32) -> (i32, i32, i32) {
    %c0_i32 = arith.constant 0 : i32
    %c0_i32_0 = arith.constant 0 : i32
    return %arg0, %arg1, %c0_i32 : i32, i32, i32
  }
}

</mosaic_0001>

<llo_original>
// kernel: tpu_custom_call.1
$region0: #{tpu_custom_call.1}
  #allocation0 [shape = 'u32[]', space=smem, size = 0x4, offset = 0x4, fixed_abs, tag = 'smem constant byte address 0x4 - core index']
  #allocation1 [shape = 'u32[144,128]{1,0:T(1,128)}', space=vmem, size = 0x12000, scoped, tag = 'internal scratch']
  %s0 = inlined_call_operand.vmem [shape: bf16[2,36,256], index: 0, kind: input, shape index: {}]
  %s1 = inlined_call_operand.vmem [shape: bf16[32,36], index: 1, kind: input, shape index: {}]
  %s2 = inlined_call_operand.hbm [shape: f32[2,32,256], index: 2, kind: output, shape index: {}]
  %s3 = sld [smem:[#allocation0]]
  $region41: #{tpu_custom_call.1} parent=0
    _
  %s5 = ssub.s32 1, %s3
  %s6 = scalar_select 0, %s5, %s3
  $region1: #{tpu_custom_call.1} parent=0
    #allocation2 [shape = 'u8[65536]{0}', space=vmem, size = 0x10000, scoped, tag = 'output window, operand 0']
    #allocation3 [shape = 's32[2]{0}', space=sflag, size = 0x8, scoped, tag = 'scoped memory for tpu_custom_call.1']
    %7 = vsyncpa [#allocation3], 0
    %s8 = scalar_lea.sflag [#allocation3], 1
    %9 = vsyncpa %s8, 0
    loop: start=0, step=1, limit=4
    $region2: #{tpu_custom_call.1} parent=1 // loop_pre_header
      _
    $region3: #{tpu_custom_call.1} parent=1 // loop_header
      %s11 = sphi 0, %s15
      %p12 = scmp.ge.s32.totalorder %s11, 4
      %s18 = sphi 0, %s30
      %s19 = sphi 0, %s26
      %s20 = sphi 0, %s18
      %s21 = sphi 0, %s19
      %s22 = sphi 0, %s20
      %s23 = sphi 0, %s21
      %s33 = sphi 0, %s35
      %s36 = sphi 0, %s33
      %s37 = sphi 0, %s36
      %s53 = sphi 0, %s37
      %s59 = sphi 0, %s61
      %s62 = sphi 0, %s59
      %s63 = sphi 0, %s62
      %s79 = sphi 0, %s63
      %s87 = sphi 0, %s89
      %s90 = sphi 0, %s87
      %s91 = sphi 0, %s90
      %s107 = sphi 0, %s91
    $region4: #{tpu_custom_call.1} parent=1 // loop_header_branch
      %14 = sbr.rel (%p12) target = $region8
    $region5: #{tpu_custom_call.1} parent=1 // loop_body
      %s16 = ssub.s32 %s11, 1
      %s17 = ssub.s32 %s11, 2
      %s24 = sadd.s32 1, %s19
      %p25 = scmp.ge.s32.totalorder %s24, 1
      %s26 = scalar_select %p25, 0, %s24
      %s27 = sadd.s32 1, %s18
      %s28 = scalar_select %p25, %s27, %s18
      %p29 = scmp.ge.s32.totalorder %s28, 2
      %s30 = scalar_select %p29, 0, %s28
      %s31 = ssub.s32 %s18, %s30
      %p32 = scmp.eq.s32.totalorder %s31, 0
      %s34 = sadd.s32 %s33, 1
      %s35 = scalar_select %p32, %s33, %s34
      %p38 = pneg %p32
      %p39 = scmp.eq.s32.totalorder %s11, 1
      %p40 = por %p38, %p39
      %p41 = scmp.ne.s32.totalorder %s33, %s36
      %p42 = scmp.eq.s32.totalorder %s11, 0
      %p43 = por %p41, %p42
      %p44 = scmp.ne.s32.totalorder %s33, %s36
      %p45 = scmp.eq.s32.totalorder %s16, 1
      %p46 = por %p44, %p45
      %p47 = scmp.ne.s32.totalorder %s36, %s37
      %p48 = scmp.eq.s32.totalorder %s16, 0
      %p49 = por %p47, %p48
      %p50 = scmp.ne.s32.totalorder %s36, %s37
      %p51 = scmp.eq.s32.totalorder %s17, 1
      %p52 = por %p50, %p51
      %p54 = scmp.ne.s32.totalorder %s37, %s53
      %p55 = scmp.eq.s32.totalorder %s17, 0
      %p56 = por %p54, %p55
      %s57 = ssub.s32 %s19, %s26
      %p58 = scmp.eq.s32.totalorder %s57, 0
      %s60 = sadd.s32 %s59, 1
      %s61 = scalar_select %p58, %s59, %s60
      %p64 = pneg %p58
      %p65 = scmp.eq.s32.totalorder %s11, 1
      %p66 = por %p64, %p65
      %p67 = scmp.ne.s32.totalorder %s59, %s62
      %p68 = scmp.eq.s32.totalorder %s11, 0
      %p69 = por %p67, %p68
      %p70 = scmp.ne.s32.totalorder %s59, %s62
      %p71 = scmp.eq.s32.totalorder %s16, 1
      %p72 = por %p70, %p71
      %p73 = scmp.ne.s32.totalorder %s62, %s63
      %p74 = scmp.eq.s32.totalorder %s16, 0
      %p75 = por %p73, %p74
      %p76 = scmp.ne.s32.totalorder %s62, %s63
      %p77 = scmp.eq.s32.totalorder %s17, 1
      %p78 = por %p76, %p77
      %p80 = scmp.ne.s32.totalorder %s63, %s79
      %p81 = scmp.eq.s32.totalorder %s17, 0
      %p82 = por %p80, %p81
      %s83 = ssub.s32 %s18, %s30
      %s84 = ssub.s32 %s19, %s26
      %s85 = sor.u32 %s83, %s84
      %p86 = scmp.eq.s32.totalorder %s85, 0
      %s88 = sadd.s32 %s87, 1
      %s89 = scalar_select %p86, %s87, %s88
      %p92 = pneg %p86
      %p93 = scmp.eq.s32.totalorder %s11, 1
      %p94 = por %p92, %p93
      %p95 = scmp.ne.s32.totalorder %s87, %s90
      %p96 = scmp.eq.s32.totalorder %s11, 0
      %p97 = por %p95, %p96
      %p98 = scmp.ne.s32.totalorder %s87, %s90
      %p99 = scmp.eq.s32.totalorder %s16, 1
      %p100 = por %p98, %p99
      %p101 = scmp.ne.s32.totalorder %s90, %s91
      %p102 = scmp.eq.s32.totalorder %s16, 0
      %p103 = por %p101, %p102
      %p104 = scmp.ne.s32.totalorder %s90, %s91
      %p105 = scmp.eq.s32.totalorder %s17, 1
      %p106 = por %p104, %p105
      %p108 = scmp.ne.s32.totalorder %s91, %s107
      %p109 = scmp.eq.s32.totalorder %s17, 0
      %p110 = por %p108, %p109
      %p111 = scmp.le.s32.totalorder 1, %s11
      %p112 = scmp.lt.s32.totalorder %s11, 3
      %p113 = pnand %p111, %p112
      %p114 = pneg %p113
      // Predicated region
      $region9: #{tpu_custom_call.1} parent=5 // pred_check
        _
      $region10: #{tpu_custom_call.1} parent=5 // pred_check_branch
        %116 = sbr.rel (%p113) target = $region12
      $region11: #{tpu_custom_call.1} parent=5 // pred_region
        %s117 = ssub.s32 %s11, 1
        // Predicated region
        $region13: #{tpu_custom_call.1} parent=11 // pred_check
          %p118 = pneg %p75
        $region14: #{tpu_custom_call.1} parent=11 // pred_check_branch
          %120 = sbr.rel (%p118) target = $region16
        $region15: #{tpu_custom_call.1} parent=11 // pred_region
          %s121 = smul.u32 4, %s21
          %p122 = scmp.lt.s32.totalorder %s121, 3
          %s123 = scalar_select %p122, %s121, 3
          %s124 = smul.addr %s123, 4
          %s125 = scalar_lea.vmem %s1, %s124
          %s126 = smul.u32 4, %s21
        $region16: #{tpu_custom_call.1} parent=11 // pred_fallthru
          _
      $region12: #{tpu_custom_call.1} parent=5 // pred_fallthru
        _
      %p127 = scmp.lt.s32.totalorder %s11, 2
      // Predicated region
      $region17: #{tpu_custom_call.1} parent=5 // pred_check
        %p128 = pneg %p127
      $region18: #{tpu_custom_call.1} parent=5 // pred_check_branch
        %130 = sbr.rel (%p128) target = $region20
      $region19: #{tpu_custom_call.1} parent=5 // pred_region
        // Predicated region
        $region21: #{tpu_custom_call.1} parent=19 // pred_check
          %p131 = pneg %p43
        $region22: #{tpu_custom_call.1} parent=19 // pred_check_branch
          %133 = sbr.rel (%p131) target = $region24
        $region23: #{tpu_custom_call.1} parent=19 // pred_region
          %p134 = scmp.lt.s32.totalorder %s18, 1
          %s135 = scalar_select %p134, %s18, 1
          %s136 = smul.addr %s135, 10
          %s137 = smul.addr %s136, 4
          %s138 = scalar_lea.vmem %s0, %s137
        $region24: #{tpu_custom_call.1} parent=19 // pred_fallthru
          _
      $region20: #{tpu_custom_call.1} parent=5 // pred_fallthru
        _
      %p139 = scmp.le.s32.totalorder 1, %s11
      %p140 = scmp.lt.s32.totalorder %s11, 3
      %p141 = pnand %p139, %p140
      %p142 = pneg %p141
      // Predicated region
      $region25: #{tpu_custom_call.1} parent=5 // pred_check
        _
      $region26: #{tpu_custom_call.1} parent=5 // pred_check_branch
        %144 = sbr.rel (%p141) target = $region28
      $region27: #{tpu_custom_call.1} parent=5 // pred_region
        %s145 = ssub.s32 %s11, 1
        %p146 = scmp.lt.s32.totalorder %s20, 1
        %s147 = scalar_select %p146, %s20, 1
        %s148 = smul.addr %s147, 10
        %s149 = smul.addr %s148, 4
        %s150 = scalar_lea.vmem %s0, %s149
        %p151 = pneg %p49
        %p152 = pneg %p46
        %s153 = smul.u32 4, %s21
        %p154 = scmp.lt.s32.totalorder %s153, 3
        %s155 = scalar_select %p154, %s153, 3
        %s156 = smul.addr %s155, 4
        %s157 = scalar_lea.vmem %s1, %s156
        %p158 = pneg %p75
        %p159 = pneg %p72
        %p160 = pneg %p103
        %p161 = pneg %p100
        %s162 = sand.u32 %s90, 1
        %s163 = scalar_lea.sflag [#allocation3], %s162
        %s164 = sand.u32 %s90, 1
        %s165 = smul.addr %s164, 64
        %s166 = scalar_lea.vmem [#allocation2], %s165
        %p167 = scmp.lt.s32.totalorder %s20, 1
        %s168 = scalar_select %p167, %s20, 1
        %s169 = smul.addr %s168, 10
        %s170 = smul.addr %s169, 4
        %s171 = scalar_lea.vmem %s0, %s170
        %s172 = smul.u32 4, %s21
        %p173 = scmp.lt.s32.totalorder %s172, 3
        %s174 = scalar_select %p173, %s172, 3
        %s175 = smul.addr %s174, 4
        %s176 = scalar_lea.vmem %s1, %s175
        %s177 = smul.u32 4, %s21
        %s178 = smul.u32 4, %s21
        %v180 = vld [vmem:[%s176] sm:$0xf]
        %v181 = vld [vmem:[%s176 + $0x4] sm:$0xf]
        %v182 = vld [vmem:[%s176 + $0x8] sm:$0xf]
        %v183 = vld [vmem:[%s176 + $0xc] sm:$0xf]
        %v184 = vld [vmem:[%s171] sm:$0xff]
        %v185 = vld [vmem:[%s171 + $0x8] sm:$0xff]
        %v186 = vld [vmem:[%s171 + $0x10] sm:$0xff]
        %v187 = vld [vmem:[%s171 + $0x18] sm:$0xff]
        %v188 = vld [vmem:[%s171 + $0x20] sm:$0x33]
        %v193 = vunpack.c.l.b16 %v180
        %v194 = vunpack.c.l.b16 %v181
        %v195 = vunpack.c.l.b16 %v182
        %v196 = vunpack.c.l.b16 %v183
        %v197 = vpack.c.b16 %v194, %v193
        %v198 = vpack.c.b16 %v196, %v195
        %v204 = vunpack.c.l.b16 %v184
        %v205 = vunpack.c.h.b16 %v184
        %v206 = vunpack.c.l.b16 %v185
        %v207 = vunpack.c.h.b16 %v185
        %v208 = vunpack.c.l.b16 %v186
        %v209 = vunpack.c.h.b16 %v186
        %v210 = vunpack.c.l.b16 %v187
        %v211 = vunpack.c.h.b16 %v187
        %v212 = vunpack.c.l.b16 %v188
        %v213 = vunpack.c.h.b16 %v188
        %v214 = vpack.c.b16 %v206, %v204
        %v215 = vpack.c.b16 %v207, %v205
        %v216 = vpack.c.b16 %v210, %v208
        %v217 = vpack.c.b16 %v211, %v209
        %v218 = vpack.c.b16 %v212, %v212
        %v219 = vpack.c.b16 %v213, %v213
        %vm224 = vcmask 293888
        %v226 = vsel %vm224, %v197, 0
        %v229 = vsel %vm224, %v198, 0
        %vm231 = vcmask 1041408
        %v233 = vsel %vm231, %v218, 0
        %v236 = vsel %vm231, %v219, 0
        %238 = vmatprep.subr.bf16.mxu0 0
        %239 = vmatpush1.bf16.msra.mxu0 0
        %240 = vmatprep.subr.bf16.mxu0 0
        %241 = vmatpush1.bf16.msra.mxu0 0
        %242 = vmatprep.subr.bf16.mxu0 0
        %243 = vmatpush1.bf16.msra.mxu0 0
        %244 = vmatprep.subr.bf16.mxu0 0
        %245 = vmatpush1.bf16.msra.mxu0 0
        %246 = vmatprep.subr.bf16.mxu0 0
        %247 = vmatpush1.bf16.msra.mxu0 0
        %248 = vmatprep.subr.bf16.mxu0 %v236
        %249 = vmatpush1.bf16.msra.mxu0 %v233
        %250 = vmatprep.subr.bf16.mxu0 %v217
        %251 = vmatpush1.bf16.msra.mxu0 %v216
        %252 = vmatprep.subr.bf16.mxu0 %v215
        %253 = vmatpush1.bf16.msra.mxu0 %v214
        %254 = vmatprep.subr.bf16.mxu0 0
        %255 = vmatpush2.bf16.msra.mxu0 0
        %256 = vmatprep.subr.bf16.mxu0 0
        %257 = vmatpush2.bf16.msra.mxu0 0
        %258 = vmatprep.subr.bf16.mxu0 0
        %259 = vmatpush2.bf16.msra.mxu0 0
        %260 = vmatprep.subr.bf16.mxu0 0
        %261 = vmatpush2.bf16.msra.mxu0 0
        %262 = vmatprep.subr.bf16.mxu0 0
        %263 = vmatpush2.bf16.msra.mxu0 0
        %264 = vmatprep.subr.bf16.mxu0 0
        %265 = vmatpush2.bf16.msra.mxu0 0
        %266 = vmatprep.subr.bf16.mxu0 0
        %267 = vmatpush2.bf16.msra.mxu0 0
        %268 = vmatprep.subr.bf16.mxu0 0
        %269 = vmatpush2.bf16.msra.mxu0 0
        %270 = vmatprep.mubr.bf16.mxu0 0
        %271 = vmatmul.mubr.bf16.gmra.mxu0 %v226
        %v272 = vpop.f32.mrf.mxu0
        %v273 = vadd.f32 0.0, %v272
        %v274 = vpop.f32.mrf.mxu0
        %v275 = vadd.f32 0.0, %v274
        %v276 = vpop.f32.mrf.mxu0
        %v277 = vadd.f32 0.0, %v276
        %v278 = vpop.f32.mrf.mxu0
        %v279 = vadd.f32 0.0, %v278
        %280 = vmatprep.mubr.bf16.mxu0 0
        %281 = vmatmul.mubr.bf16.gmra.mxu0 %v229
        %v282 = vpop.f32.mrf.mxu0
        %v283 = vadd.f32 0.0, %v282
        %v284 = vpop.f32.mrf.mxu0
        %v285 = vadd.f32 0.0, %v284
        %v286 = vpop.f32.mrf.mxu0
        %v287 = vadd.f32 0.0, %v286
        %v288 = vpop.f32.mrf.mxu0
        %v289 = vadd.f32 0.0, %v288
        %290 = vdwg.mxu0
        %v291 = vadd.f32 %v273, %v275
        %292 = vadd.xlane.f32.xlu0 %v291
        %v293 = vpop.xlane.xlu0 %292
        %v294 = vadd.f32 %v277, %v279
        %295 = vadd.xlane.f32.xlu0 %v294
        %v296 = vpop.xlane.xlu0 %295
        %v297 = vadd.f32 %v283, %v285
        %298 = vadd.xlane.f32.xlu0 %v297
        %v299 = vpop.xlane.xlu0 %298
        %v300 = vadd.f32 %v287, %v289
        %301 = vadd.xlane.f32.xlu0 %v300
        %v302 = vpop.xlane.xlu0 %301
        %v303 = vmul.f32 %v293, 0.00390625
        %v304 = vmul.f32 %v296, 0.00390625
        %v305 = vmul.f32 %v299, 0.00390625
        %v306 = vmul.f32 %v302, 0.00390625
        %v307 = vsub.f32 %v273, %v303
        %v308 = vsub.f32 %v275, %v303
        %v309 = vsub.f32 %v277, %v304
        %v310 = vsub.f32 %v279, %v304
        %v311 = vsub.f32 %v283, %v305
        %v312 = vsub.f32 %v285, %v305
        %v313 = vsub.f32 %v287, %v306
        %v314 = vsub.f32 %v289, %v306
        %v315 = vmul.f32 %v307, %v307
        %v316 = vmul.f32 %v308, %v308
        %v317 = vmul.f32 %v309, %v309
        %v318 = vmul.f32 %v310, %v310
        %v319 = vmul.f32 %v311, %v311
        %v320 = vmul.f32 %v312, %v312
        %v321 = vmul.f32 %v313, %v313
        %v322 = vmul.f32 %v314, %v314
        %v323 = vadd.f32 %v315, %v316
        %324 = vadd.xlane.f32.xlu0 %v323
        %v325 = vpop.xlane.xlu0 %324
        %v326 = vadd.f32 %v317, %v318
        %327 = vadd.xlane.f32.xlu0 %v326
        %v328 = vpop.xlane.xlu0 %327
        %v329 = vadd.f32 %v319, %v320
        %330 = vadd.xlane.f32.xlu0 %v329
        %v331 = vpop.xlane.xlu0 %330
        %v332 = vadd.f32 %v321, %v322
        %333 = vadd.xlane.f32.xlu0 %v332
        %v334 = vpop.xlane.xlu0 %333
        %v335 = vmul.f32 %v325, 0.00390625
        %v336 = vmul.f32 %v328, 0.00390625
        %v337 = vmul.f32 %v331, 0.00390625
        %v338 = vmul.f32 %v334, 0.00390625
        %v339 = vadd.f32 %v335, 1e-05
        %v340 = vadd.f32 %v336, 1e-05
        %v341 = vadd.f32 %v337, 1e-05
        %v342 = vadd.f32 %v338, 1e-05
        %v343 = vrsqrt.pop %v339
        %v344 = vrsqrt.pop %v340
        %v345 = vrsqrt.pop %v341
        %v346 = vrsqrt.pop %v342
        %v347 = vmul.f32 %v307, %v343
        %v348 = vmul.f32 %v308, %v343
        %v349 = vmul.f32 %v309, %v344
        %v350 = vmul.f32 %v310, %v344
        %v351 = vmul.f32 %v311, %v345
        %v352 = vmul.f32 %v312, %v345
        %v353 = vmul.f32 %v313, %v346
        %v354 = vmul.f32 %v314, %v346
        %v355 = vmax.f32 %v347, 0.0
        %v356 = vmax.f32 %v348, 0.0
        %v357 = vmax.f32 %v349, 0.0
        %v358 = vmax.f32 %v350, 0.0
        %v359 = vmax.f32 %v351, 0.0
        %v360 = vmax.f32 %v352, 0.0
        %v361 = vmax.f32 %v353, 0.0
        %v362 = vmax.f32 %v354, 0.0
        %363 = vst [vmem:[%s166] sm:$0xff] %v355
        %364 = vst [vmem:[%s166 + $0x8] sm:$0xff] %v356
        %365 = vst [vmem:[%s166 + $0x10] sm:$0xff] %v357
        %366 = vst [vmem:[%s166 + $0x18] sm:$0xff] %v358
        %367 = vst [vmem:[%s166 + $0x20] sm:$0xff] %v359
        %368 = vst [vmem:[%s166 + $0x28] sm:$0xff] %v360
        %369 = vst [vmem:[%s166 + $0x30] sm:$0xff] %v361
        %370 = vst [vmem:[%s166 + $0x38] sm:$0xff] %v362
        %s371 = sand.u32 %s90, 1
        %s372 = scalar_lea.sflag [#allocation3], %s371
        %s373 = sand.u32 %s90, 1
        %s374 = smul.addr %s373, 64
        %s375 = scalar_lea.vmem [#allocation2], %s374
        // Predicated region
        $region29: #{tpu_custom_call.1} parent=27 // pred_check
          %p376 = pneg %p100
        $region30: #{tpu_custom_call.1} parent=27 // pred_check_branch
          %378 = sbr.rel (%p376) target = $region32
        $region31: #{tpu_custom_call.1} parent=27 // pred_region
          %s379 = smul.u32 4, %s21
          %s381 = ssub.s32 1024, 1024
          %382 = vsyncadd %s372, %s381
          %s383 = smul.addr %s379, 2
          %s384 = smul.addr %s20, 8
          %s385 = sadd.s32 %s383, %s384
          %s386 = smul.addr %s385, 128
          %s387 = scalar_lea.hbm %s2, %s386
          %s388 = sshll.u32 %s375, 4
          %s389 = int_to_ptr.vmem [resolvable:$true] %s388
          %394 = dma.vmem_to_hbm [thread:$0]  %s389, 1024, %s387, %s372, 256, 256, 16
        $region32: #{tpu_custom_call.1} parent=27 // pred_fallthru
          _
      $region28: #{tpu_custom_call.1} parent=5 // pred_fallthru
        _
      %p395 = scmp.le.s32.totalorder 2, %s11
      // Predicated region
      $region33: #{tpu_custom_call.1} parent=5 // pred_check
        %p396 = pneg %p395
      $region34: #{tpu_custom_call.1} parent=5 // pred_check_branch
        %398 = sbr.rel (%p396) target = $region36
      $region35: #{tpu_custom_call.1} parent=5 // pred_region
        %s399 = ssub.s32 %s11, 2
        // Predicated region
        $region37: #{tpu_custom_call.1} parent=35 // pred_check
          %p400 = pneg %p106
        $region38: #{tpu_custom_call.1} parent=35 // pred_check_branch
          %402 = sbr.rel (%p400) target = $region40
        $region39: #{tpu_custom_call.1} parent=35 // pred_region
          %s403 = sand.u32 %s91, 1
          %s404 = scalar_lea.sflag [#allocation3], %s403
          %s405 = sand.u32 %s91, 1
          %s406 = smul.addr %s405, 64
          %s407 = scalar_lea.vmem [#allocation2], %s406
          %408 = dma.done %s404, 1024
        $region40: #{tpu_custom_call.1} parent=35 // pred_fallthru
          _
      $region36: #{tpu_custom_call.1} parent=5 // pred_fallthru
        _
    $region6: #{tpu_custom_call.1} parent=1 // loop_footer
      %s15 = sadd.s32 1, %s11
    $region7: #{tpu_custom_call.1} parent=1 // loop_footer_branch
      %10 = sbr.rel target = $region3
    $region8: #{tpu_custom_call.1} parent=1 // loop_exit
      _
    %409 = vsyncpa [#allocation3], 1
    %s410 = scalar_lea.sflag [#allocation3], 1
    %411 = vsyncpa %s410, 1

</llo_original>
